<compile_context>
chip_gen: v7x
topology: tpu7x:2x2x1
jax: 0.10.0
libtpu: 0.0.40
codegen_flags: <defaults>
</compile_context>

<pallas_src>
import math

import jax
import jax.numpy as jnp
from jax.experimental import pallas as pl
from jax.experimental.pallas import tpu as pltpu


def make_dct_matrix(L, dtype=jnp.float32):
    # D[n, k] = 2 * cos(pi * k * (2n + 1) / (2L))   (DCT-II, norm=None)
    n = jnp.arange(L, dtype=jnp.float32)[:, None]     # (L, 1)
    k = jnp.arange(L, dtype=jnp.float32)[None, :]     # (1, L)
    return (2.0 * jnp.cos(math.pi * k * (2.0 * n + 1.0) / (2.0 * L))).astype(dtype)


def _dct_channel_kernel(x_ref, dctm_ref, gamma_ref, beta_ref, w1_ref, w2_ref, o_ref):
    """One grid step: TB fused batch elements as a flat (R, L) slab, R = TB*C.

    x_ref  : (R, L)        f32 input slab
    dctm   : (L, L)        DCT matrix, matmul dtype (bf16 or f32)
    gamma  : (1, L)        LayerNorm weight, f32
    beta   : (1, L)        LayerNorm bias, f32
    w1     : (TB*2C, R)    block-diag kron(I_TB, conv1.weight), matmul dtype
    w2     : (R, TB*2C)    block-diag kron(I_TB, conv2.weight), matmul dtype
    o_ref  : (R, L)        f32 output slab
    """
    x = x_ref[...]                                     # (R, L) f32
    dctm = dctm_ref[...]
    mm_dtype = dctm.dtype

    # --- DCT-II over the last dim: one big 2-D GEMM, f32 accumulation ---
    freq = jnp.dot(x.astype(mm_dtype), dctm,
                   preferred_element_type=jnp.float32)            # (R, L) f32

    # --- LayerNorm over L (eps = 1e-6), statistics in f32 ---
    mean = jnp.mean(freq, axis=-1, keepdims=True)                  # (R, 1)
    centered = freq - mean
    var = jnp.mean(centered * centered, axis=-1, keepdims=True)
    ln = centered * jax.lax.rsqrt(var + 1e-6)
    ln = ln * gamma_ref[...] + beta_ref[...]                       # (R, L) f32

    # --- fc: Conv1d(C->2C,k=1) -> [Dropout: identity] -> ReLU
    #         -> Conv1d(2C->C,k=1) -> Sigmoid
    # Channel mixing for all TB fused batches at once via block-diagonal weights.
    h = jnp.dot(w1_ref[...], ln.astype(mm_dtype),
                preferred_element_type=jnp.float32)                # (TB*2C, L) f32
    h = jnp.maximum(h, 0.0)
    g = jnp.dot(w2_ref[...], h.astype(mm_dtype),
                preferred_element_type=jnp.float32)                # (R, L) f32
    g = jax.nn.sigmoid(g)

    # --- gate the input ---
    o_ref[...] = (x * g).astype(o_ref.dtype)


def _est_vmem_bytes(tb, C, L, mm_itemsize):
    """Conservative per-step VMEM estimate (double-buffered I/O + invariants)."""
    rows = tb * C
    io = rows * L * 4                       # one f32 (rows, L) block
    dct = L * L * mm_itemsize
    wts = 4 * rows * rows * mm_itemsize     # kron(I, w1) + kron(I, w2)
    return 4 * io + 2 * dct + 2 * wts + 8 * rows * L * 4   # + f32 intermediates


def _choose_tb(B, C, L, mm_itemsize, *, target_rows=256, vmem_budget=36 * 2 ** 20):
    """Pick how many batch elements to fuse per grid step.

    Goals: fill the MXU M dimension (~256 fused rows), keep the fused row count
    8-aligned (sublane tiling of the block), keep >= 2 grid steps when the batch
    allows it (v7x has 2 TensorCores), and stay within a conservative VMEM
    budget (v7x physical VMEM is 64 MiB).
    """
    step = 8 // math.gcd(C, 8)                 # smallest tb with (tb*C) % 8 == 0
    tb = max(1, target_rows // C)
    if B >= 2:
        tb = min(tb, max(1, B // 2))           # leave >= 2 grid steps if possible
    tb = min(tb, max(1, B))
    tb = step * ((tb + step - 1) // step)      # round up to alignment granularity
    while tb > step and _est_vmem_bytes(tb, C, L, mm_itemsize) > vmem_budget:
        tb -= step
    return tb


def dct_channel_block(x, gamma, beta, w1, w2, *, use_bf16=True, tb=None):
    """x: (B, C, L) float32; gamma/beta: (L,); w1: (2C, C); w2: (C, 2C)."""
    B, C, L = x.shape
    out_dtype = x.dtype
    mm_dtype = jnp.bfloat16 if use_bf16 else jnp.float32
    mm_itemsize = jnp.dtype(mm_dtype).itemsize

    if tb is None:
        tb = _choose_tb(B, C, L, mm_itemsize)
    rows = tb * C

    # Pad the batch so it divides evenly into TB-sized blocks.  Padded rows are
    # zeros (DCT/LN/sigmoid of zeros stays finite) and are sliced off afterwards.
    Bp = ((B + tb - 1) // tb) * tb
    xp = jnp.pad(x, ((0, Bp - B), (0, 0), (0, 0))) if Bp != B else x
    x2 = xp.reshape(Bp * C, L).astype(jnp.float32)

    dct_mat = make_dct_matrix(L, mm_dtype)
    gamma2 = gamma.reshape(1, L).astype(jnp.float32)
    beta2 = beta.reshape(1, L).astype(jnp.float32)

    # 1x1 channel convs for TB fused batches == block-diagonal 2-D GEMMs.
    eye = jnp.eye(tb, dtype=jnp.float32)
    w1bd = jnp.kron(eye, w1.astype(jnp.float32)).astype(mm_dtype)  # (tb*2C, rows)
    w2bd = jnp.kron(eye, w2.astype(jnp.float32)).astype(mm_dtype)  # (rows, tb*2C)

    grid = (Bp // tb,)

    # Explicit VMEM re-budget only when the working set actually needs it
    # (keeps the small-shape path identical to the known-good configuration).
    est_vmem = _est_vmem_bytes(tb, C, L, mm_itemsize)
    vmem_limit = None
    if est_vmem > 24 * 2 ** 20:
        vmem_limit = int(min(56 * 2 ** 20, est_vmem + 8 * 2 ** 20))

    cost = pl.CostEstimate(
        flops=int(2 * B * C * L * L            # DCT GEMM
                  + 8 * B * C * C * L),        # two 1x1 channel convs
        transcendentals=int(B * C * L + B * C),
        bytes_accessed=int(2 * B * C * L * 4
                           + L * L * mm_itemsize
                           + (w1bd.size + w2bd.size) * mm_itemsize
                           + 2 * L * 4),
    )

    out2 = pl.pallas_call(
        _dct_channel_kernel,
        out_shape=jax.ShapeDtypeStruct((Bp * C, L), jnp.float32),
        grid_spec=pltpu.PrefetchScalarGridSpec(
            num_scalar_prefetch=0,
            grid=grid,
            in_specs=[
                pl.BlockSpec((rows, L), lambda i: (i, 0)),            # x slab
                pl.BlockSpec((L, L), lambda i: (0, 0)),               # DCT matrix
                pl.BlockSpec((1, L), lambda i: (0, 0)),               # LN gamma
                pl.BlockSpec((1, L), lambda i: (0, 0)),               # LN beta
                pl.BlockSpec((tb * 2 * C, rows), lambda i: (0, 0)),   # kron(I, w1)
                pl.BlockSpec((rows, tb * 2 * C), lambda i: (0, 0)),   # kron(I, w2)
            ],
            out_specs=pl.BlockSpec((rows, L), lambda i: (i, 0)),
        ),
        compiler_params=pltpu.CompilerParams(
            dimension_semantics=("parallel",),
            vmem_limit_bytes=vmem_limit),
        cost_estimate=cost,
    )(x2, dct_mat, gamma2, beta2, w1bd, w2bd)

    out = out2.reshape(Bp, C, L)[:B]
    return out.astype(out_dtype)


def _reference(x, gamma, beta, w1, w2):
    """Pure-JAX reference for correctness checking."""
    B, C, L = x.shape
    D = make_dct_matrix(L, jnp.float32)
    freq = jnp.einsum("bcn,nk->bck", x, D)
    mean = jnp.mean(freq, axis=-1, keepdims=True)
    var = jnp.mean((freq - mean) ** 2, axis=-1, keepdims=True)
    ln = (freq - mean) / jnp.sqrt(var + 1e-6)
    ln = ln * gamma[None, None, :] + beta[None, None, :]
    h = jnp.maximum(jnp.einsum("oc,bcl->bol", w1, ln), 0.0)
    g = jax.nn.sigmoid(jnp.einsum("co,bol->bcl", w2, h))
    return x * g


if __name__ == "__main__":
    B, C, L = 2, 4, 16

    key = jax.random.PRNGKey(0)
    kx, k1, k2 = jax.random.split(key, 3)

    x = jax.random.normal(kx, (B, C, L), dtype=jnp.float32)

    # Deterministic parameter init (synthetic, not a checkpoint load).
    # Conv1d(C, 2C, k=1, bias=False): weight (2C, C, 1) -> squeeze -> (2C, C)
    bound1 = 1.0 / math.sqrt(C)
    w1 = jax.random.uniform(k1, (2 * C, C), jnp.float32, -bound1, bound1)
    # Conv1d(2C, C, k=1, bias=False): weight (C, 2C, 1) -> squeeze -> (C, 2C)
    bound2 = 1.0 / math.sqrt(2 * C)
    w2 = jax.random.uniform(k2, (C, 2 * C), jnp.float32, -bound2, bound2)
    # LayerNorm([L]) default init: weight = 1, bias = 0
    gamma = jnp.ones((L,), jnp.float32)
    beta = jnp.zeros((L,), jnp.float32)

    ref = _reference(x, gamma, beta, w1, w2)

    # f32 matmul path: tight check against the pure-JAX reference.
    out_f32 = jax.block_until_ready(
        dct_channel_block(x, gamma, beta, w1, w2, use_bf16=False))
    assert out_f32.shape == (B, C, L)
    assert jnp.allclose(out_f32, ref, atol=1e-4, rtol=1e-4), "f32 mismatch vs reference"

    # Default bf16-input / f32-accumulation path: tolerance accounts for the
    # intentional bf16 quantization of the matmul inputs.
    out_bf16 = jax.block_until_ready(
        dct_channel_block(x, gamma, beta, w1, w2, use_bf16=True))
    assert out_bf16.shape == (B, C, L)
    assert jnp.allclose(out_bf16, ref, atol=3e-2, rtol=3e-2), "bf16 mismatch vs reference"

    print("KERNEL_OK")
</pallas_src>

<mosaic_0001>
module attributes {stable_mosaic.version = 11 : i64} {
  func.func @_dct_channel_kernel(%arg0: i32, %arg1: memref<8x16xf32, #tpu.memory_space<vmem>>, %arg2: memref<16x16xf32, #tpu.memory_space<vmem>>, %arg3: memref<1x16xf32, #tpu.memory_space<vmem>>, %arg4: memref<1x16xf32, #tpu.memory_space<vmem>>, %arg5: memref<16x8xf32, #tpu.memory_space<vmem>>, %arg6: memref<8x16xf32, #tpu.memory_space<vmem>>, %arg7: memref<8x16xf32, #tpu.memory_space<vmem>>) attributes {dimension_semantics = [#tpu.dimension_semantics<parallel>], iteration_bounds = array<i64: 1>, scalar_prefetch = 0 : i64, scratch_operands = 0 : i64, tpu.core_type = #tpu.core_type<tc>, window_params = [{transform_indices = @transform_0, window_bounds = array<i64: 8, 16>}, {pipeline_mode = #tpu.pipeline_mode<synchronous>, transform_indices = @transform_1, window_bounds = array<i64: 16, 16>}, {pipeline_mode = #tpu.pipeline_mode<synchronous>, transform_indices = @transform_2, window_bounds = array<i64: 1, 16>}, {pipeline_mode = #tpu.pipeline_mode<synchronous>, transform_indices = @transform_3, window_bounds = array<i64: 1, 16>}, {pipeline_mode = #tpu.pipeline_mode<synchronous>, transform_indices = @transform_4, window_bounds = array<i64: 16, 8>}, {pipeline_mode = #tpu.pipeline_mode<synchronous>, transform_indices = @transform_5, window_bounds = array<i64: 8, 16>}, {transform_indices = @transform_6, window_bounds = array<i64: 8, 16>}]} {
    %c0 = arith.constant 0 : index
    %c0_0 = arith.constant 0 : index
    %0 = vector.load %arg1[%c0, %c0_0] : memref<8x16xf32, #tpu.memory_space<vmem>>, vector<8x16xf32>
    %c0_1 = arith.constant 0 : index
    %c0_2 = arith.constant 0 : index
    %1 = vector.load %arg2[%c0_1, %c0_2] : memref<16x16xf32, #tpu.memory_space<vmem>>, vector<16x16xf32>
    %cst = arith.constant dense<0.000000e+00> : vector<8x16xf32>
    %2 = tpu.matmul %0, %1, %cst {dimension_numbers = #tpu.dot_dimension_numbers<[1], [0], [0], [1], [0, 0, 1, 1], [], []>} : vector<8x16xf32>, vector<16x16xf32>, vector<8x16xf32> -> vector<8x16xf32>
    %cst_3 = arith.constant dense<0.000000e+00> : vector<8xf32>
    %3 = vector.multi_reduction <add>, %2, %cst_3 [1] : vector<8x16xf32> to vector<8xf32>
    %4 = vector.shape_cast %3 : vector<8xf32> to vector<8x1xf32>
    %cst_4 = arith.constant 1.600000e+01 : f32
    %5 = vector.broadcast %cst_4 : f32 to vector<8x1xf32>
    %6 = arith.divf %4, %5 : vector<8x1xf32>
    %7 = vector.broadcast %6 : vector<8x1xf32> to vector<8x16xf32>
    %8 = arith.subf %2, %7 : vector<8x16xf32>
    %9 = arith.mulf %8, %8 : vector<8x16xf32>
    %cst_5 = arith.constant dense<0.000000e+00> : vector<8xf32>
    %10 = vector.multi_reduction <add>, %9, %cst_5 [1] : vector<8x16xf32> to vector<8xf32>
    %11 = vector.shape_cast %10 : vector<8xf32> to vector<8x1xf32>
    %cst_6 = arith.constant 1.600000e+01 : f32
    %12 = vector.broadcast %cst_6 : f32 to vector<8x1xf32>
    %13 = arith.divf %11, %12 : vector<8x1xf32>
    %cst_7 = arith.constant 9.99999997E-7 : f32
    %14 = vector.broadcast %cst_7 : f32 to vector<8x1xf32>
    %15 = arith.addf %13, %14 : vector<8x1xf32>
    %16 = math.rsqrt %15 : vector<8x1xf32>
    %17 = vector.broadcast %16 : vector<8x1xf32> to vector<8x16xf32>
    %18 = arith.mulf %8, %17 : vector<8x16xf32>
    %c0_8 = arith.constant 0 : index
    %c0_9 = arith.constant 0 : index
    %19 = vector.load %arg3[%c0_8, %c0_9] : memref<1x16xf32, #tpu.memory_space<vmem>>, vector<1x16xf32>
    %20 = vector.broadcast %19 : vector<1x16xf32> to vector<8x16xf32>
    %21 = arith.mulf %18, %20 : vector<8x16xf32>
    %c0_10 = arith.constant 0 : index
    %c0_11 = arith.constant 0 : index
    %22 = vector.load %arg4[%c0_10, %c0_11] : memref<1x16xf32, #tpu.memory_space<vmem>>, vector<1x16xf32>
    %23 = vector.broadcast %22 : vector<1x16xf32> to vector<8x16xf32>
    %24 = arith.addf %21, %23 : vector<8x16xf32>
    %c0_12 = arith.constant 0 : index
    %c0_13 = arith.constant 0 : index
    %25 = vector.load %arg5[%c0_12, %c0_13] : memref<16x8xf32, #tpu.memory_space<vmem>>, vector<16x8xf32>
    %cst_14 = arith.constant dense<0.000000e+00> : vector<16x16xf32>
    %26 = tpu.matmul %25, %24, %cst_14 {dimension_numbers = #tpu.dot_dimension_numbers<[1], [0], [0], [1], [0, 0, 1, 1], [], []>} : vector<16x8xf32>, vector<8x16xf32>, vector<16x16xf32> -> vector<16x16xf32>
    %cst_15 = arith.constant 0.000000e+00 : f32
    %27 = vector.broadcast %cst_15 : f32 to vector<16x16xf32>
    %28 = arith.maximumf %26, %27 : vector<16x16xf32>
    %c0_16 = arith.constant 0 : index
    %c0_17 = arith.constant 0 : index
    %29 = vector.load %arg6[%c0_16, %c0_17] : memref<8x16xf32, #tpu.memory_space<vmem>>, vector<8x16xf32>
    %cst_18 = arith.constant dense<0.000000e+00> : vector<8x16xf32>
    %30 = tpu.matmul %29, %28, %cst_18 {dimension_numbers = #tpu.dot_dimension_numbers<[1], [0], [0], [1], [0, 0, 1, 1], [], []>} : vector<8x16xf32>, vector<16x16xf32>, vector<8x16xf32> -> vector<8x16xf32>
    %31 = arith.negf %30 : vector<8x16xf32>
    %32 = math.exp %31 : vector<8x16xf32>
    %cst_19 = arith.constant 1.000000e+00 : f32
    %33 = vector.broadcast %cst_19 : f32 to vector<8x16xf32>
    %34 = arith.addf %33, %32 : vector<8x16xf32>
    %35 = arith.divf %33, %34 : vector<8x16xf32>
    %36 = arith.mulf %0, %35 : vector<8x16xf32>
    %c0_20 = arith.constant 0 : index
    %c0_21 = arith.constant 0 : index
    %37 = vector.load %arg7[%c0_20, %c0_21] : memref<8x16xf32, #tpu.memory_space<vmem>>, vector<8x16xf32>
    tpu.vector_store %arg7[%c0_20, %c0_21], %36 {strides = array<i32>} : memref<8x16xf32, #tpu.memory_space<vmem>>, vector<8x16xf32>,
    return
  }
  func.func @transform_0(%arg0: i32) -> (i32, i32) {
    %c0_i32 = arith.constant 0 : i32
    %c0_i32_0 = arith.constant 0 : i32
    return %arg0, %c0_i32 : i32, i32
  }
  func.func @transform_1(%arg0: i32) -> (i32, i32) {
    %c0_i32 = arith.constant 0 : i32
    %c0_i32_0 = arith.constant 0 : i32
    %c0_i32_1 = arith.constant 0 : i32
    return %c0_i32, %c0_i32_0 : i32, i32
  }
  func.func @transform_2(%arg0: i32) -> (i32, i32) {
    %c0_i32 = arith.constant 0 : i32
    %c0_i32_0 = arith.constant 0 : i32
    %c0_i32_1 = arith.constant 0 : i32
    return %c0_i32, %c0_i32_0 : i32, i32
  }
  func.func @transform_3(%arg0: i32) -> (i32, i32) {
    %c0_i32 = arith.constant 0 : i32
    %c0_i32_0 = arith.constant 0 : i32
    %c0_i32_1 = arith.constant 0 : i32
    return %c0_i32, %c0_i32_0 : i32, i32
  }
  func.func @transform_4(%arg0: i32) -> (i32, i32) {
    %c0_i32 = arith.constant 0 : i32
    %c0_i32_0 = arith.constant 0 : i32
    %c0_i32_1 = arith.constant 0 : i32
    return %c0_i32, %c0_i32_0 : i32, i32
  }
  func.func @transform_5(%arg0: i32) -> (i32, i32) {
    %c0_i32 = arith.constant 0 : i32
    %c0_i32_0 = arith.constant 0 : i32
    %c0_i32_1 = arith.constant 0 : i32
    return %c0_i32, %c0_i32_0 : i32, i32
  }
  func.func @transform_6(%arg0: i32) -> (i32, i32) {
    %c0_i32 = arith.constant 0 : i32
    %c0_i32_0 = arith.constant 0 : i32
    return %arg0, %c0_i32 : i32, i32
  }
}

</mosaic_0001>

<llo_original>
// kernel: tpu_custom_call.1
$region0: #{tpu_custom_call.1}
  #allocation0 [shape = 'u32[]', space=smem, size = 0x4, offset = 0x4, fixed_abs, tag = 'smem constant byte address 0x4 - core index']
  #allocation1 [shape = 'u32[144,128]{1,0:T(1,128)}', space=vmem, size = 0x12000, scoped, tag = 'internal scratch']
  %s0 = inlined_call_operand.vmem [shape: f32[8,16], index: 0, kind: input, shape index: {}]
  %s1 = inlined_call_operand.vmem [shape: f32[16,16], index: 1, kind: input, shape index: {}]
  %s2 = inlined_call_operand.vmem [shape: f32[1,16], index: 2, kind: input, shape index: {}]
  %s3 = inlined_call_operand.vmem [shape: f32[1,16], index: 3, kind: input, shape index: {}]
  %s4 = inlined_call_operand.vmem [shape: f32[16,8], index: 4, kind: input, shape index: {}]
  %s5 = inlined_call_operand.vmem [shape: f32[8,16], index: 5, kind: input, shape index: {}]
  %s6 = inlined_call_operand.hbm [shape: f32[8,16], index: 6, kind: output, shape index: {}]
  %s7 = sld [smem:[#allocation0]]
  $region34: #{tpu_custom_call.1} parent=0
    _
  %s9 = ssub.s32 1, %s7
  %s10 = scalar_select 0, %s9, %s7
  $region1: #{tpu_custom_call.1} parent=0
    #allocation2 [shape = 'u8[4096]{0}', space=vmem, size = 0x1000, scoped, tag = 'output window, operand 0, single buffered']
    #allocation3 [shape = 's32[1]{0}', space=sflag, size = 0x4, scoped, tag = 'scoped memory for tpu_custom_call.1']
    %11 = vsyncpa [#allocation3], 0
    // Predicated region
    $region2: #{tpu_custom_call.1} parent=1 // pred_check
      _
    $region3: #{tpu_custom_call.1} parent=1 // pred_check_branch
      %13 = sbr.rel (0) target = $region5
    $region4: #{tpu_custom_call.1} parent=1 // pred_region
      _
    $region5: #{tpu_custom_call.1} parent=1 // pred_fallthru
      _
    // Predicated region
    $region6: #{tpu_custom_call.1} parent=1 // pred_check
      _
    $region7: #{tpu_custom_call.1} parent=1 // pred_check_branch
      %15 = sbr.rel (0) target = $region9
    $region8: #{tpu_custom_call.1} parent=1 // pred_region
      _
    $region9: #{tpu_custom_call.1} parent=1 // pred_fallthru
      _
    // Predicated region
    $region10: #{tpu_custom_call.1} parent=1 // pred_check
      _
    $region11: #{tpu_custom_call.1} parent=1 // pred_check_branch
      %17 = sbr.rel (0) target = $region13
    $region12: #{tpu_custom_call.1} parent=1 // pred_region
      _
    $region13: #{tpu_custom_call.1} parent=1 // pred_fallthru
      _
    // Predicated region
    $region14: #{tpu_custom_call.1} parent=1 // pred_check
      _
    $region15: #{tpu_custom_call.1} parent=1 // pred_check_branch
      %19 = sbr.rel (0) target = $region17
    $region16: #{tpu_custom_call.1} parent=1 // pred_region
      _
    $region17: #{tpu_custom_call.1} parent=1 // pred_fallthru
      _
    // Predicated region
    $region18: #{tpu_custom_call.1} parent=1 // pred_check
      _
    $region19: #{tpu_custom_call.1} parent=1 // pred_check_branch
      %21 = sbr.rel (0) target = $region21
    $region20: #{tpu_custom_call.1} parent=1 // pred_region
      _
    $region21: #{tpu_custom_call.1} parent=1 // pred_fallthru
      _
    // Predicated region
    $region22: #{tpu_custom_call.1} parent=1 // pred_check
      _
    $region23: #{tpu_custom_call.1} parent=1 // pred_check_branch
      %23 = sbr.rel (0) target = $region25
    $region24: #{tpu_custom_call.1} parent=1 // pred_region
      _
    $region25: #{tpu_custom_call.1} parent=1 // pred_fallthru
      _
    %v24 = vld [vmem:[%s0] sm:$0xff]
    %v25 = vld [vmem:[%s1] sm:$0xff]
    %v26 = vld [vmem:[%s1 + $0x8] sm:$0xff]
    %vm27 = vcmask 130048
    %v29 = vsel %vm27, %v24, 0
    %31 = vmatprep.subr.mxu0 0.0
    %32 = vmatpush1.msra.mxu0 %v25
    %33 = vmatprep.subr.mxu0 0.0
    %34 = vmatpush1.msra.mxu0 %v26
    %35 = vmatprep.subr.mxu0 0.0
    %36 = vmatpush1.msra.mxu0 0.0
    %37 = vmatprep.subr.mxu0 0.0
    %38 = vmatpush1.msra.mxu0 0.0
    %39 = vmatprep.subr.mxu0 0.0
    %40 = vmatpush1.msra.mxu0 0.0
    %41 = vmatprep.subr.mxu0 0.0
    %42 = vmatpush1.msra.mxu0 0.0
    %43 = vmatprep.subr.mxu0 0.0
    %44 = vmatpush1.msra.mxu0 0.0
    %45 = vmatprep.subr.mxu0 0.0
    %46 = vmatpush1.msra.mxu0 0.0
    %47 = vmatprep.subr.mxu0 0.0
    %48 = vmatpush1.msra.mxu0 0.0
    %49 = vmatprep.subr.mxu0 0.0
    %50 = vmatpush1.msra.mxu0 0.0
    %51 = vmatprep.subr.mxu0 0.0
    %52 = vmatpush1.msra.mxu0 0.0
    %53 = vmatprep.subr.mxu0 0.0
    %54 = vmatpush1.msra.mxu0 0.0
    %55 = vmatprep.subr.mxu0 0.0
    %56 = vmatpush1.msra.mxu0 0.0
    %57 = vmatprep.subr.mxu0 0.0
    %58 = vmatpush1.msra.mxu0 0.0
    %59 = vmatprep.subr.mxu0 0.0
    %60 = vmatpush1.msra.mxu0 0.0
    %61 = vmatprep.subr.mxu0 0.0
    %62 = vmatpush1.msra.mxu0 0.0
    %63 = vmatprep.subr.mxu0 0.0
    %64 = vmatpush1.msra.mxu0 0.0
    %65 = vmatprep.subr.mxu0 0.0
    %66 = vmatpush1.msra.mxu0 0.0
    %67 = vmatprep.subr.mxu0 0.0
    %68 = vmatpush1.msra.mxu0 0.0
    %69 = vmatprep.subr.mxu0 0.0
    %70 = vmatpush1.msra.mxu0 0.0
    %71 = vmatprep.subr.mxu0 0.0
    %72 = vmatpush1.msra.mxu0 0.0
    %73 = vmatprep.subr.mxu0 0.0
    %74 = vmatpush1.msra.mxu0 0.0
    %75 = vmatprep.subr.mxu0 0.0
    %76 = vmatpush1.msra.mxu0 0.0
    %77 = vmatprep.subr.mxu0 0.0
    %78 = vmatpush1.msra.mxu0 0.0
    %79 = vmatprep.subr.mxu0 0.0
    %80 = vmatpush1.msra.mxu0 0.0
    %81 = vmatprep.subr.mxu0 0.0
    %82 = vmatpush1.msra.mxu0 0.0
    %83 = vmatprep.subr.mxu0 0.0
    %84 = vmatpush1.msra.mxu0 0.0
    %85 = vmatprep.subr.mxu0 0.0
    %86 = vmatpush1.msra.mxu0 0.0
    %87 = vmatprep.subr.mxu0 0.0
    %88 = vmatpush1.msra.mxu0 0.0
    %89 = vmatprep.subr.mxu0 0.0
    %90 = vmatpush1.msra.mxu0 0.0
    %91 = vmatprep.subr.mxu0 0.0
    %92 = vmatpush1.msra.mxu0 0.0
    %93 = vmatprep.subr.mxu0 0.0
    %94 = vmatpush1.msra.mxu0 0.0
    %95 = vmatprep.mubr.f32.mxu0 0.0
    %96 = vmatmul.mubr.f32.gmra.mrb[0].mxu0 %v29
    %v97 = vpop.f32.mrb[0].mxu0
    %v98 = vadd.f32 0.0, %v97
    %v99 = vpop.f32.mrb[0].mxu0
    %100 = vdwg.mxu0
    %v101 = vsel %vm27, %v98, 0.0
    %102 = vadd.xlane.f32.xlu0 %v101
    %v103 = vpop.xlane.xlu0 %102
    %v104 = vrcp.pop 16.0
    %v105 = vmul.f32 %v103, %v104
    %v106 = vsub.f32 %v98, %v105
    %v107 = vmul.f32 %v106, %v106
    %v108 = vsel %vm27, %v107, 0.0
    %109 = vadd.xlane.f32.xlu0 %v108
    %v110 = vpop.xlane.xlu0 %109
    %v111 = vmul.f32 %v110, %v104
    %v112 = vadd.f32 %v111, 1e-06
    %v113 = vrsqrt.pop %v112
    %v114 = vmul.f32 %v106, %v113
    %v115 = vld [vmem:[%s2] sm:$0x1]
    %v117 = vlaneseq
    %v118 = vshrl.u32 %v117, 7
    %v119 = vsub.s32 0, %v118
    %v120 = vrot.slane %v115, %v119
    %v122 = vmul.f32 %v114, %v120
    %v123 = vld [vmem:[%s3] sm:$0x1]
    %v125 = vlaneseq
    %v126 = vshrl.u32 %v125, 7
    %v127 = vsub.s32 0, %v126
    %v128 = vrot.slane %v123, %v127
    %v130 = vadd.f32 %v122, %v128
    %v131 = vld [vmem:[%s4] sm:$0xff]
    %v132 = vld [vmem:[%s4 + $0x8] sm:$0xff]
    %vm133 = vcmask 64512
    %v135 = vsel %vm133, %v131, 0
    %v138 = vsel %vm133, %v132, 0
    %140 = vmatprep.subr.mxu0 0.0
    %141 = vmatpush1.msra.mxu0 %v130
    %142 = vmatprep.subr.mxu0 0.0
    %143 = vmatpush1.msra.mxu0 0.0
    %144 = vmatprep.subr.mxu0 0.0
    %145 = vmatpush1.msra.mxu0 0.0
    %146 = vmatprep.subr.mxu0 0.0
    %147 = vmatpush1.msra.mxu0 0.0
    %148 = vmatprep.subr.mxu0 0.0
    %149 = vmatpush1.msra.mxu0 0.0
    %150 = vmatprep.subr.mxu0 0.0
    %151 = vmatpush1.msra.mxu0 0.0
    %152 = vmatprep.subr.mxu0 0.0
    %153 = vmatpush1.msra.mxu0 0.0
    %154 = vmatprep.subr.mxu0 0.0
    %155 = vmatpush1.msra.mxu0 0.0
    %156 = vmatprep.subr.mxu0 0.0
    %157 = vmatpush1.msra.mxu0 0.0
    %158 = vmatprep.subr.mxu0 0.0
    %159 = vmatpush1.msra.mxu0 0.0
    %160 = vmatprep.subr.mxu0 0.0
    %161 = vmatpush1.msra.mxu0 0.0
    %162 = vmatprep.subr.mxu0 0.0
    %163 = vmatpush1.msra.mxu0 0.0
    %164 = vmatprep.subr.mxu0 0.0
    %165 = vmatpush1.msra.mxu0 0.0
    %166 = vmatprep.subr.mxu0 0.0
    %167 = vmatpush1.msra.mxu0 0.0
    %168 = vmatprep.subr.mxu0 0.0
    %169 = vmatpush1.msra.mxu0 0.0
    %170 = vmatprep.subr.mxu0 0.0
    %171 = vmatpush1.msra.mxu0 0.0
    %172 = vmatprep.subr.mxu0 0.0
    %173 = vmatpush1.msra.mxu0 0.0
    %174 = vmatprep.subr.mxu0 0.0
    %175 = vmatpush1.msra.mxu0 0.0
    %176 = vmatprep.subr.mxu0 0.0
    %177 = vmatpush1.msra.mxu0 0.0
    %178 = vmatprep.subr.mxu0 0.0
    %179 = vmatpush1.msra.mxu0 0.0
    %180 = vmatprep.subr.mxu0 0.0
    %181 = vmatpush1.msra.mxu0 0.0
    %182 = vmatprep.subr.mxu0 0.0
    %183 = vmatpush1.msra.mxu0 0.0
    %184 = vmatprep.subr.mxu0 0.0
    %185 = vmatpush1.msra.mxu0 0.0
    %186 = vmatprep.subr.mxu0 0.0
    %187 = vmatpush1.msra.mxu0 0.0
    %188 = vmatprep.subr.mxu0 0.0
    %189 = vmatpush1.msra.mxu0 0.0
    %190 = vmatprep.subr.mxu0 0.0
    %191 = vmatpush1.msra.mxu0 0.0
    %192 = vmatprep.subr.mxu0 0.0
    %193 = vmatpush1.msra.mxu0 0.0
    %194 = vmatprep.subr.mxu0 0.0
    %195 = vmatpush1.msra.mxu0 0.0
    %196 = vmatprep.subr.mxu0 0.0
    %197 = vmatpush1.msra.mxu0 0.0
    %198 = vmatprep.subr.mxu0 0.0
    %199 = vmatpush1.msra.mxu0 0.0
    %200 = vmatprep.subr.mxu0 0.0
    %201 = vmatpush1.msra.mxu0 0.0
    %202 = vmatprep.subr.mxu0 0.0
    %203 = vmatpush1.msra.mxu0 0.0
    %204 = vmatprep.mubr.f32.mxu0 0.0
    %205 = vmatmul.mubr.f32.gmra.mrb[0].mxu0 %v135
    %v206 = vpop.f32.mrb[0].mxu0
    %v207 = vadd.f32 0.0, %v206
    %v208 = vpop.f32.mrb[0].mxu0
    %209 = vmatprep.mubr.f32.mxu0 0.0
    %210 = vmatmul.mubr.f32.gmra.mrb[0].mxu0 %v138
    %v211 = vpop.f32.mrb[0].mxu0
    %v212 = vadd.f32 0.0, %v211
    %v213 = vpop.f32.mrb[0].mxu0
    %214 = vdwg.mxu0
    %v215 = vmax.f32 %v207, 0.0
    %v216 = vmax.f32 %v212, 0.0
    %v217 = vld [vmem:[%s5] sm:$0xff]
    %v219 = vsel %vm27, %v217, 0
    %221 = vmatprep.subr.mxu0 0.0
    %222 = vmatpush1.msra.mxu0 %v215
    %223 = vmatprep.subr.mxu0 0.0
    %224 = vmatpush1.msra.mxu0 %v216
    %225 = vmatprep.subr.mxu0 0.0
    %226 = vmatpush1.msra.mxu0 0.0
    %227 = vmatprep.subr.mxu0 0.0
    %228 = vmatpush1.msra.mxu0 0.0
    %229 = vmatprep.subr.mxu0 0.0
    %230 = vmatpush1.msra.mxu0 0.0
    %231 = vmatprep.subr.mxu0 0.0
    %232 = vmatpush1.msra.mxu0 0.0
    %233 = vmatprep.subr.mxu0 0.0
    %234 = vmatpush1.msra.mxu0 0.0
    %235 = vmatprep.subr.mxu0 0.0
    %236 = vmatpush1.msra.mxu0 0.0
    %237 = vmatprep.subr.mxu0 0.0
    %238 = vmatpush1.msra.mxu0 0.0
    %239 = vmatprep.subr.mxu0 0.0
    %240 = vmatpush1.msra.mxu0 0.0
    %241 = vmatprep.subr.mxu0 0.0
    %242 = vmatpush1.msra.mxu0 0.0
    %243 = vmatprep.subr.mxu0 0.0
    %244 = vmatpush1.msra.mxu0 0.0
    %245 = vmatprep.subr.mxu0 0.0
    %246 = vmatpush1.msra.mxu0 0.0
    %247 = vmatprep.subr.mxu0 0.0
    %248 = vmatpush1.msra.mxu0 0.0
    %249 = vmatprep.subr.mxu0 0.0
    %250 = vmatpush1.msra.mxu0 0.0
    %251 = vmatprep.subr.mxu0 0.0
    %252 = vmatpush1.msra.mxu0 0.0
    %253 = vmatprep.subr.mxu0 0.0
    %254 = vmatpush1.msra.mxu0 0.0
    %255 = vmatprep.subr.mxu0 0.0
    %256 = vmatpush1.msra.mxu0 0.0
    %257 = vmatprep.subr.mxu0 0.0
    %258 = vmatpush1.msra.mxu0 0.0
    %259 = vmatprep.subr.mxu0 0.0
    %260 = vmatpush1.msra.mxu0 0.0
    %261 = vmatprep.subr.mxu0 0.0
    %262 = vmatpush1.msra.mxu0 0.0
    %263 = vmatprep.subr.mxu0 0.0
    %264 = vmatpush1.msra.mxu0 0.0
    %265 = vmatprep.subr.mxu0 0.0
    %266 = vmatpush1.msra.mxu0 0.0
    %267 = vmatprep.subr.mxu0 0.0
    %268 = vmatpush1.msra.mxu0 0.0
    %269 = vmatprep.subr.mxu0 0.0
    %270 = vmatpush1.msra.mxu0 0.0
    %271 = vmatprep.subr.mxu0 0.0
    %272 = vmatpush1.msra.mxu0 0.0
    %273 = vmatprep.subr.mxu0 0.0
    %274 = vmatpush1.msra.mxu0 0.0
    %275 = vmatprep.subr.mxu0 0.0
    %276 = vmatpush1.msra.mxu0 0.0
    %277 = vmatprep.subr.mxu0 0.0
    %278 = vmatpush1.msra.mxu0 0.0
    %279 = vmatprep.subr.mxu0 0.0
    %280 = vmatpush1.msra.mxu0 0.0
    %281 = vmatprep.subr.mxu0 0.0
    %282 = vmatpush1.msra.mxu0 0.0
    %283 = vmatprep.subr.mxu0 0.0
    %284 = vmatpush1.msra.mxu0 0.0
    %285 = vmatprep.mubr.f32.mxu0 0.0
    %286 = vmatmul.mubr.f32.gmra.mrb[0].mxu0 %v219
    %v287 = vpop.f32.mrb[0].mxu0
    %v288 = vadd.f32 0.0, %v287
    %v289 = vpop.f32.mrb[0].mxu0
    %290 = vdwg.mxu0
    %v291 = vxor.u32 %v288, 2147483648
    %v292 = vmul.f32 %v291, 1.442695
    %v293 = vpow.pop %v292
    %v294 = vadd.f32 %v293, 1.0
    %v295 = vrcp.pop %v294
    %v296 = vmul.f32 1.0, %v295
    %v297 = vmul.f32 %v24, %v296
    %298 = vst.msk [vmem:[#allocation2] sm:$0xff] %vm27, %v297
    // Predicated region
    $region26: #{tpu_custom_call.1} parent=1 // pred_check
      _
    $region27: #{tpu_custom_call.1} parent=1 // pred_check_branch
      %300 = sbr.rel (0) target = $region29
    $region28: #{tpu_custom_call.1} parent=1 // pred_region
      %s302 = ssub.s32 128, 128
      %303 = vsyncadd [#allocation3], %s302
      %s305 = sshll.u32 [#allocation2], 4
      %s306 = int_to_ptr.vmem [resolvable:$true] %s305
      %308 = dma.vmem_to_hbm [thread:$0]  %s306, 128, %s6, [#allocation3]
    $region29: #{tpu_custom_call.1} parent=1 // pred_fallthru
      _
    // Predicated region
    $region30: #{tpu_custom_call.1} parent=1 // pred_check
      _
    $region31: #{tpu_custom_call.1} parent=1 // pred_check_branch
      %310 = sbr.rel (0) target = $region33
    $region32: #{tpu_custom_call.1} parent=1 // pred_region
      %311 = dma.done [#allocation3], 128
    $region33: #{tpu_custom_call.1} parent=1 // pred_fallthru
      _
    %312 = vsyncpa [#allocation3], 1

</llo_original>
